<compile_context>
chip_gen: v7x
topology: tpu7x:2x2x1
jax: 0.10.0
libtpu: 0.0.40
codegen_flags: <defaults>
</compile_context>

<pallas_src>
import functools

import jax
import jax.numpy as jnp
from jax.experimental import pallas as pl
from jax.experimental.pallas import tpu as pltpu


def _round_up(x, m):
    return ((x + m - 1) // m) * m


# ---------------------------------------------------------------------------
# Kernel
# ---------------------------------------------------------------------------
def duel_kernel(x_ref, p_ref, o_ref, *,
                ni, no, r_w1, r_b1, r_w2, r_b2, L, inv_bn):
    x = x_ref[...]                                   # [B, ni]

    # Static, tile-aligned slices of the packed parameter slab.
    w1 = p_ref[r_w1:r_w1 + ni, :]                    # [ni, L]   (w1a | w1v, zero-padded)
    b1 = p_ref[r_b1:r_b1 + 1, :]                     # [1, L]    (b1a | b1v)
    w2 = p_ref[r_w2:r_w2 + L, :]                     # [L, L]    block-diag (adv cols | val col)
    b2 = p_ref[r_b2:r_b2 + 1, :]                     # [1, L]

    # Fused layer 1 for both branches + ReLU
    # (lanes [:dim] = advantage hidden, [dim:2*dim] = value hidden).
    h = jnp.maximum(
        jnp.dot(x, w1, preferred_element_type=jnp.float32) + b1, 0.0)        # [B, L]

    # Fused layer 2: lanes [:no] = advantage, lane `no` = value, rest = 0.
    res = jnp.dot(h, w2, preferred_element_type=jnp.float32) + b2            # [B, L]

    lane = jax.lax.broadcasted_iota(jnp.int32, res.shape, 1)
    adv_lanes = jnp.where(lane < no, res, 0.0)
    # Global mean over all B*no advantage elements, kept vectorized as [1, 1]
    # (XLU reductions + compile-time reciprocal, no scalar extraction).
    adv_mean = jnp.sum(jnp.sum(adv_lanes, axis=1, keepdims=True),
                       axis=0, keepdims=True) * inv_bn                       # [1, 1]
    # Value column pulled out via a lane reduction (avoids a 1-lane slice).
    val = jnp.sum(jnp.where(lane == no, res, 0.0), axis=1, keepdims=True)    # [B, 1]

    adv = res[:, :no]                                                        # [B, no]
    o_ref[...] = adv + (val - adv_mean)            # == val + (adv - adv.mean())


# ---------------------------------------------------------------------------
# Parameter packing (done once at init)
# ---------------------------------------------------------------------------
def pack_params(params, ni, no, dim):
    """Pack the 8 per-branch tensors into one padded [K, L] f32 slab."""
    w1a, b1a, w2a, b2a, w1v, b1v, w2v, b2v = params
    H = 2 * dim                                        # fused hidden width
    L = max(_round_up(H, 128), _round_up(no + 1, 128))  # slab lane width

    r_w1 = 0
    r_b1 = _round_up(ni, 8)
    r_w2 = r_b1 + 8
    r_b2 = r_w2 + L
    K = r_b2 + 8

    slab = jnp.zeros((K, L), jnp.float32)
    # Layer-1 fused weight / bias: [adv | val] along the output axis.
    slab = slab.at[r_w1:r_w1 + ni, :H].set(jnp.concatenate([w1a, w1v], axis=1))
    slab = slab.at[r_b1, :H].set(jnp.concatenate([b1a, b1v], axis=1)[0])
    # Layer-2 block-diagonal weight: adv block -> lanes [:no], val column -> lane `no`.
    slab = slab.at[r_w2:r_w2 + dim, :no].set(w2a)
    slab = slab.at[r_w2 + dim:r_w2 + 2 * dim, no:no + 1].set(w2v)
    # Layer-2 fused bias.
    slab = slab.at[r_b2, :no].set(b2a[0])
    slab = slab.at[r_b2, no].set(b2v[0, 0])

    meta = dict(ni=ni, no=no, r_w1=r_w1, r_b1=r_b1, r_w2=r_w2, r_b2=r_b2, L=L)
    return slab, meta


# ---------------------------------------------------------------------------
# Wrapper
# ---------------------------------------------------------------------------
def duel_model(x, slab, meta):
    B = x.shape[0]
    no = meta["no"]
    kernel = functools.partial(duel_kernel, inv_bn=1.0 / (B * no), **meta)
    vmem = pl.BlockSpec(memory_space=pltpu.MemorySpace.VMEM)
    return pl.pallas_call(
        kernel,
        out_shape=jax.ShapeDtypeStruct((B, no), jnp.float32),
        in_specs=[vmem, vmem],
        out_specs=vmem,
    )(x, slab)


# ---------------------------------------------------------------------------
# Init (matches the PyTorch module) + pure-JAX reference
# ---------------------------------------------------------------------------
def init_linear(key, n_in, n_out):
    """nn.Linear with weight ~ N(0, 0.1) (as in Model.__init__),
    bias ~ U(-1/sqrt(n_in), 1/sqrt(n_in)) (PyTorch default). Stored [in, out]."""
    kw, kb = jax.random.split(key)
    w = 0.1 * jax.random.normal(kw, (n_in, n_out), dtype=jnp.float32)
    bound = 1.0 / jnp.sqrt(jnp.float32(n_in))
    b = jax.random.uniform(kb, (1, n_out), dtype=jnp.float32,
                           minval=-bound, maxval=bound)
    return w, b


def make_params(key, ni, no, dim):
    k1, k2, k3, k4 = jax.random.split(key, 4)
    w1a, b1a = init_linear(k1, ni, dim)
    w2a, b2a = init_linear(k2, dim, no)
    w1v, b1v = init_linear(k3, ni, dim)
    w2v, b2v = init_linear(k4, dim, 1)
    return (w1a, b1a, w2a, b2a, w1v, b1v, w2v, b2v)


def duel_model_ref(x, params):
    (w1a, b1a, w2a, b2a, w1v, b1v, w2v, b2v) = params
    adv = jnp.maximum(x @ w1a + b1a, 0.0) @ w2a + b2a
    val = jnp.maximum(x @ w1v + b1v, 0.0) @ w2v + b2v
    return val + (adv - jnp.mean(adv))


if __name__ == "__main__":
    B, ni, no, dim = 8, 32, 4, 64
    key = jax.random.PRNGKey(0)
    kx, kp = jax.random.split(key)
    x = jax.random.normal(kx, (B, ni), dtype=jnp.float32)
    params = make_params(kp, ni, no, dim)

    slab, meta = pack_params(params, ni, no, dim)   # one-time packing

    out = duel_model(x, slab, meta)
    out = jax.block_until_ready(out)

    ref = duel_model_ref(x, params)
    assert out.shape == (B, no)
    assert jnp.allclose(out, ref, atol=1e-5, rtol=1e-5)

    print("KERNEL_OK")
</pallas_src>

<mosaic_0001>
module attributes {stable_mosaic.version = 11 : i64} {
  func.func @duel_kernel(%arg0: memref<8x32xf32, #tpu.memory_space<vmem>>, %arg1: memref<176x128xf32, #tpu.memory_space<vmem>>, %arg2: memref<8x4xf32, #tpu.memory_space<vmem>>) attributes {dimension_semantics = [], scalar_prefetch = 0 : i64, scratch_operands = 0 : i64, tpu.core_type = #tpu.core_type<tc>} {
    %c0 = arith.constant 0 : index
    %c0_0 = arith.constant 0 : index
    %0 = vector.load %arg0[%c0, %c0_0] : memref<8x32xf32, #tpu.memory_space<vmem>>, vector<8x32xf32>
    %c0_1 = arith.constant 0 : index
    %c0_2 = arith.constant 0 : index
    %1 = vector.load %arg1[%c0_1, %c0_2] : memref<176x128xf32, #tpu.memory_space<vmem>>, vector<32x128xf32>
    %c32 = arith.constant 32 : index
    %c0_3 = arith.constant 0 : index
    %2 = vector.load %arg1[%c32, %c0_3] : memref<176x128xf32, #tpu.memory_space<vmem>>, vector<1x128xf32>
    %c40 = arith.constant 40 : index
    %c0_4 = arith.constant 0 : index
    %3 = vector.load %arg1[%c40, %c0_4] : memref<176x128xf32, #tpu.memory_space<vmem>>, vector<128x128xf32>
    %c168 = arith.constant 168 : index
    %c0_5 = arith.constant 0 : index
    %4 = vector.load %arg1[%c168, %c0_5] : memref<176x128xf32, #tpu.memory_space<vmem>>, vector<1x128xf32>
    %cst = arith.constant dense<0.000000e+00> : vector<8x128xf32>
    %5 = tpu.matmul %0, %1, %cst {dimension_numbers = #tpu.dot_dimension_numbers<[1], [0], [0], [1], [0, 0, 1, 1], [], []>} : vector<8x32xf32>, vector<32x128xf32>, vector<8x128xf32> -> vector<8x128xf32>
    %6 = vector.broadcast %2 : vector<1x128xf32> to vector<8x128xf32>
    %7 = arith.addf %5, %6 : vector<8x128xf32>
    %cst_6 = arith.constant 0.000000e+00 : f32
    %8 = vector.broadcast %cst_6 : f32 to vector<8x128xf32>
    %9 = arith.maximumf %7, %8 : vector<8x128xf32>
    %cst_7 = arith.constant dense<0.000000e+00> : vector<8x128xf32>
    %10 = tpu.matmul %9, %3, %cst_7 {dimension_numbers = #tpu.dot_dimension_numbers<[1], [0], [0], [1], [0, 0, 1, 1], [], []>} : vector<8x128xf32>, vector<128x128xf32>, vector<8x128xf32> -> vector<8x128xf32>
    %11 = vector.broadcast %4 : vector<1x128xf32> to vector<8x128xf32>
    %12 = arith.addf %10, %11 : vector<8x128xf32>
    %13 = tpu.iota {dimensions = array<i32: 1>} : vector<8x128xi32>
    %c4_i32 = arith.constant 4 : i32
    %14 = vector.broadcast %c4_i32 : i32 to vector<8x128xi32>
    %15 = arith.cmpi slt, %13, %14 : vector<8x128xi32>
    %cst_8 = arith.constant 0.000000e+00 : f32
    %16 = vector.broadcast %cst_8 : f32 to vector<8x128xf32>
    %17 = arith.select %15, %12, %16 : vector<8x128xi1>, vector<8x128xf32>
    %cst_9 = arith.constant dense<0.000000e+00> : vector<8xf32>
    %18 = vector.multi_reduction <add>, %17, %cst_9 [1] : vector<8x128xf32> to vector<8xf32>
    %19 = vector.shape_cast %18 : vector<8xf32> to vector<8x1xf32>
    %cst_10 = arith.constant dense<0.000000e+00> : vector<1xf32>
    %20 = vector.multi_reduction <add>, %19, %cst_10 [0] : vector<8x1xf32> to vector<1xf32>
    %21 = vector.shape_cast %20 : vector<1xf32> to vector<1x1xf32>
    %cst_11 = arith.constant 3.125000e-02 : f32
    %22 = vector.broadcast %cst_11 : f32 to vector<1x1xf32>
    %23 = arith.mulf %21, %22 : vector<1x1xf32>
    %c4_i32_12 = arith.constant 4 : i32
    %24 = vector.broadcast %c4_i32_12 : i32 to vector<8x128xi32>
    %25 = arith.cmpi eq, %13, %24 : vector<8x128xi32>
    %cst_13 = arith.constant 0.000000e+00 : f32
    %26 = vector.broadcast %cst_13 : f32 to vector<8x128xf32>
    %27 = arith.select %25, %12, %26 : vector<8x128xi1>, vector<8x128xf32>
    %cst_14 = arith.constant dense<0.000000e+00> : vector<8xf32>
    %28 = vector.multi_reduction <add>, %27, %cst_14 [1] : vector<8x128xf32> to vector<8xf32>
    %29 = vector.shape_cast %28 : vector<8xf32> to vector<8x1xf32>
    %30 = vector.extract_strided_slice %12 {offsets = [0, 0], sizes = [8, 4], strides = [1, 1]} : vector<8x128xf32> to vector<8x4xf32>
    %31 = vector.broadcast %23 : vector<1x1xf32> to vector<8x1xf32>
    %32 = arith.subf %29, %31 : vector<8x1xf32>
    %33 = vector.broadcast %32 : vector<8x1xf32> to vector<8x4xf32>
    %34 = arith.addf %30, %33 : vector<8x4xf32>
    %c0_15 = arith.constant 0 : index
    %c0_16 = arith.constant 0 : index
    %35 = vector.load %arg2[%c0_15, %c0_16] : memref<8x4xf32, #tpu.memory_space<vmem>>, vector<8x4xf32>
    tpu.vector_store %arg2[%c0_15, %c0_16], %34 {strides = array<i32>} : memref<8x4xf32, #tpu.memory_space<vmem>>, vector<8x4xf32>,
    return
  }
}

</mosaic_0001>

<llo_original>
// kernel: tpu_custom_call.1
$region0: #{tpu_custom_call.1}
  #allocation0 [shape = 'u32[]', space=smem, size = 0x4, offset = 0x4, fixed_abs, tag = 'smem constant byte address 0x4 - core index']
  #allocation1 [shape = 'u32[144,128]{1,0:T(1,128)}', space=vmem, size = 0x12000, scoped, tag = 'internal scratch']
  %s0 = inlined_call_operand.hbm [shape: f32[8,32], index: 0, kind: input, shape index: {}]
  %s1 = inlined_call_operand.hbm [shape: f32[176,128], index: 1, kind: input, shape index: {}]
  %s2 = inlined_call_operand.vmem [shape: f32[8,4], index: 2, kind: output, shape index: {}]
  %s3 = sld [smem:[#allocation0]]
  $region26: #{tpu_custom_call.1} parent=0
    _
  %s5 = ssub.s32 1, %s3
  %s6 = scalar_select 0, %s5, %s3
  $region1: #{tpu_custom_call.1} parent=0
    #allocation2 [shape = 'u8[4096]{0}', space=vmem, size = 0x1000, scoped, tag = 'input window, operand 0, single buffered']
    #allocation3 [shape = 's32[1]{0}', space=sflag, size = 0x4, scoped, tag = 'scoped memory for tpu_custom_call.1']
    #allocation4 [shape = 'u8[90112]{0}', space=vmem, size = 0x16000, scoped, tag = 'input window, operand 1, single buffered']
    #allocation5 [shape = 's32[1]{0}', space=sflag, size = 0x4, scoped, tag = 'scoped memory for tpu_custom_call.1']
    %7 = vsyncpa [#allocation3], 0
    %8 = vsyncpa [#allocation5], 0
    // Predicated region
    $region2: #{tpu_custom_call.1} parent=1 // pred_check
      _
    $region3: #{tpu_custom_call.1} parent=1 // pred_check_branch
      %10 = sbr.rel (0) target = $region5
    $region4: #{tpu_custom_call.1} parent=1 // pred_region
      %s12 = ssub.s32 128, 128
      %13 = vsyncadd [#allocation3], %s12
      %s15 = sshll.u32 [#allocation2], 4
      %s16 = int_to_ptr.vmem [resolvable:$true] %s15
      %18 = dma.hbm_to_vmem [thread:$0]  %s0, 128, %s16, [#allocation3]
    $region5: #{tpu_custom_call.1} parent=1 // pred_fallthru
      _
    // Predicated region
    $region6: #{tpu_custom_call.1} parent=1 // pred_check
      _
    $region7: #{tpu_custom_call.1} parent=1 // pred_check_branch
      %20 = sbr.rel (0) target = $region9
    $region8: #{tpu_custom_call.1} parent=1 // pred_region
      %s22 = ssub.s32 2816, 2816
      %23 = vsyncadd [#allocation5], %s22
      %s24 = sshll.u32 [#allocation4], 4
      %s25 = int_to_ptr.vmem [resolvable:$true] %s24
      %30 = dma.hbm_to_vmem [thread:$0]  %s1, 2816, %s25, [#allocation5], 128, 128, 8
    $region9: #{tpu_custom_call.1} parent=1 // pred_fallthru
      _
    // Predicated region
    $region10: #{tpu_custom_call.1} parent=1 // pred_check
      _
    $region11: #{tpu_custom_call.1} parent=1 // pred_check_branch
      %32 = sbr.rel (0) target = $region13
    $region12: #{tpu_custom_call.1} parent=1 // pred_region
      %33 = dma.done [#allocation3], 128
    $region13: #{tpu_custom_call.1} parent=1 // pred_fallthru
      _
    // Predicated region
    $region14: #{tpu_custom_call.1} parent=1 // pred_check
      _
    $region15: #{tpu_custom_call.1} parent=1 // pred_check_branch
      %35 = sbr.rel (0) target = $region17
    $region16: #{tpu_custom_call.1} parent=1 // pred_region
      %36 = dma.done [#allocation5], 2816
    $region17: #{tpu_custom_call.1} parent=1 // pred_fallthru
      _
    %v37 = vld [vmem:[#allocation2] sm:$0xff]
    %v38 = vld [vmem:[#allocation4] sm:$0xff]
    %v39 = vld [vmem:[#allocation4 + $0x8] sm:$0xff]
    %v40 = vld [vmem:[#allocation4 + $0x10] sm:$0xff]
    %v41 = vld [vmem:[#allocation4 + $0x18] sm:$0xff]
    %v42 = vld [vmem:[#allocation4 + $0x20] sm:$0x1]
    %v43 = vld [vmem:[#allocation4 + $0x28] sm:$0xff]
    %v44 = vld [vmem:[#allocation4 + $0x30] sm:$0xff]
    %v45 = vld [vmem:[#allocation4 + $0x38] sm:$0xff]
    %v46 = vld [vmem:[#allocation4 + $0x40] sm:$0xff]
    %v47 = vld [vmem:[#allocation4 + $0x48] sm:$0xff]
    %v48 = vld [vmem:[#allocation4 + $0x50] sm:$0xff]
    %v49 = vld [vmem:[#allocation4 + $0x58] sm:$0xff]
    %v50 = vld [vmem:[#allocation4 + $0x60] sm:$0xff]
    %v51 = vld [vmem:[#allocation4 + $0x68] sm:$0xff]
    %v52 = vld [vmem:[#allocation4 + $0x70] sm:$0xff]
    %v53 = vld [vmem:[#allocation4 + $0x78] sm:$0xff]
    %v54 = vld [vmem:[#allocation4 + $0x80] sm:$0xff]
    %v55 = vld [vmem:[#allocation4 + $0x88] sm:$0xff]
    %v56 = vld [vmem:[#allocation4 + $0x90] sm:$0xff]
    %v57 = vld [vmem:[#allocation4 + $0x98] sm:$0xff]
    %v58 = vld [vmem:[#allocation4 + $0xa0] sm:$0xff]
    %v59 = vld [vmem:[#allocation4 + $0xa8] sm:$0x1]
    %v60 = vlaneseq
    %v61 = vshrl.u32 %v60, 7
    %v62 = vsub.s32 0, %v61
    %v63 = vrot.slane %v42, %v62
    %vm64 = vcmask 261120
    %v66 = vsel %vm64, %v37, 0
    %68 = vmatprep.subr.mxu0 0.0
    %69 = vmatpush1.msra.mxu0 %v38
    %70 = vmatprep.subr.mxu0 0.0
    %71 = vmatpush1.msra.mxu0 %v39
    %72 = vmatprep.subr.mxu0 0.0
    %73 = vmatpush1.msra.mxu0 %v40
    %74 = vmatprep.subr.mxu0 0.0
    %75 = vmatpush1.msra.mxu0 %v41
    %76 = vmatprep.subr.mxu0 0.0
    %77 = vmatpush1.msra.mxu0 0.0
    %78 = vmatprep.subr.mxu0 0.0
    %79 = vmatpush1.msra.mxu0 0.0
    %80 = vmatprep.subr.mxu0 0.0
    %81 = vmatpush1.msra.mxu0 0.0
    %82 = vmatprep.subr.mxu0 0.0
    %83 = vmatpush1.msra.mxu0 0.0
    %84 = vmatprep.subr.mxu0 0.0
    %85 = vmatpush1.msra.mxu0 0.0
    %86 = vmatprep.subr.mxu0 0.0
    %87 = vmatpush1.msra.mxu0 0.0
    %88 = vmatprep.subr.mxu0 0.0
    %89 = vmatpush1.msra.mxu0 0.0
    %90 = vmatprep.subr.mxu0 0.0
    %91 = vmatpush1.msra.mxu0 0.0
    %92 = vmatprep.subr.mxu0 0.0
    %93 = vmatpush1.msra.mxu0 0.0
    %94 = vmatprep.subr.mxu0 0.0
    %95 = vmatpush1.msra.mxu0 0.0
    %96 = vmatprep.subr.mxu0 0.0
    %97 = vmatpush1.msra.mxu0 0.0
    %98 = vmatprep.subr.mxu0 0.0
    %99 = vmatpush1.msra.mxu0 0.0
    %100 = vmatprep.subr.mxu0 0.0
    %101 = vmatpush1.msra.mxu0 0.0
    %102 = vmatprep.subr.mxu0 0.0
    %103 = vmatpush1.msra.mxu0 0.0
    %104 = vmatprep.subr.mxu0 0.0
    %105 = vmatpush1.msra.mxu0 0.0
    %106 = vmatprep.subr.mxu0 0.0
    %107 = vmatpush1.msra.mxu0 0.0
    %108 = vmatprep.subr.mxu0 0.0
    %109 = vmatpush1.msra.mxu0 0.0
    %110 = vmatprep.subr.mxu0 0.0
    %111 = vmatpush1.msra.mxu0 0.0
    %112 = vmatprep.subr.mxu0 0.0
    %113 = vmatpush1.msra.mxu0 0.0
    %114 = vmatprep.subr.mxu0 0.0
    %115 = vmatpush1.msra.mxu0 0.0
    %116 = vmatprep.subr.mxu0 0.0
    %117 = vmatpush1.msra.mxu0 0.0
    %118 = vmatprep.subr.mxu0 0.0
    %119 = vmatpush1.msra.mxu0 0.0
    %120 = vmatprep.subr.mxu0 0.0
    %121 = vmatpush1.msra.mxu0 0.0
    %122 = vmatprep.subr.mxu0 0.0
    %123 = vmatpush1.msra.mxu0 0.0
    %124 = vmatprep.subr.mxu0 0.0
    %125 = vmatpush1.msra.mxu0 0.0
    %126 = vmatprep.subr.mxu0 0.0
    %127 = vmatpush1.msra.mxu0 0.0
    %128 = vmatprep.subr.mxu0 0.0
    %129 = vmatpush1.msra.mxu0 0.0
    %130 = vmatprep.subr.mxu0 0.0
    %131 = vmatpush1.msra.mxu0 0.0
    %132 = vmatprep.mubr.f32.mxu0 0.0
    %133 = vmatmul.mubr.f32.gmra.mrb[0].mxu0 %v66
    %v134 = vpop.f32.mrb[0].mxu0
    %v135 = vadd.f32 %v63, %v134
    %v136 = vpop.f32.mrb[0].mxu0
    %137 = vdwg.mxu0
    %v138 = vmax.f32 %v135, 0.0
    %v139 = vlaneseq
    %v140 = vshrl.u32 %v139, 7
    %v141 = vsub.s32 0, %v140
    %v142 = vrot.slane %v59, %v141
    %143 = vmatprep.subr.mxu0 0.0
    %144 = vmatpush1.msra.mxu0 %v43
    %145 = vmatprep.subr.mxu0 0.0
    %146 = vmatpush1.msra.mxu0 %v44
    %147 = vmatprep.subr.mxu0 0.0
    %148 = vmatpush1.msra.mxu0 %v45
    %149 = vmatprep.subr.mxu0 0.0
    %150 = vmatpush1.msra.mxu0 %v46
    %151 = vmatprep.subr.mxu0 0.0
    %152 = vmatpush1.msra.mxu0 %v47
    %153 = vmatprep.subr.mxu0 0.0
    %154 = vmatpush1.msra.mxu0 %v48
    %155 = vmatprep.subr.mxu0 0.0
    %156 = vmatpush1.msra.mxu0 %v49
    %157 = vmatprep.subr.mxu0 0.0
    %158 = vmatpush1.msra.mxu0 %v50
    %159 = vmatprep.subr.mxu0 0.0
    %160 = vmatpush1.msra.mxu0 %v51
    %161 = vmatprep.subr.mxu0 0.0
    %162 = vmatpush1.msra.mxu0 %v52
    %163 = vmatprep.subr.mxu0 0.0
    %164 = vmatpush1.msra.mxu0 %v53
    %165 = vmatprep.subr.mxu0 0.0
    %166 = vmatpush1.msra.mxu0 %v54
    %167 = vmatprep.subr.mxu0 0.0
    %168 = vmatpush1.msra.mxu0 %v55
    %169 = vmatprep.subr.mxu0 0.0
    %170 = vmatpush1.msra.mxu0 %v56
    %171 = vmatprep.subr.mxu0 0.0
    %172 = vmatpush1.msra.mxu0 %v57
    %173 = vmatprep.subr.mxu0 0.0
    %174 = vmatpush1.msra.mxu0 %v58
    %175 = vmatprep.subr.mxu0 0.0
    %176 = vmatpush1.msra.mxu0 0.0
    %177 = vmatprep.subr.mxu0 0.0
    %178 = vmatpush1.msra.mxu0 0.0
    %179 = vmatprep.subr.mxu0 0.0
    %180 = vmatpush1.msra.mxu0 0.0
    %181 = vmatprep.subr.mxu0 0.0
    %182 = vmatpush1.msra.mxu0 0.0
    %183 = vmatprep.subr.mxu0 0.0
    %184 = vmatpush1.msra.mxu0 0.0
    %185 = vmatprep.subr.mxu0 0.0
    %186 = vmatpush1.msra.mxu0 0.0
    %187 = vmatprep.subr.mxu0 0.0
    %188 = vmatpush1.msra.mxu0 0.0
    %189 = vmatprep.subr.mxu0 0.0
    %190 = vmatpush1.msra.mxu0 0.0
    %191 = vmatprep.subr.mxu0 0.0
    %192 = vmatpush1.msra.mxu0 0.0
    %193 = vmatprep.subr.mxu0 0.0
    %194 = vmatpush1.msra.mxu0 0.0
    %195 = vmatprep.subr.mxu0 0.0
    %196 = vmatpush1.msra.mxu0 0.0
    %197 = vmatprep.subr.mxu0 0.0
    %198 = vmatpush1.msra.mxu0 0.0
    %199 = vmatprep.subr.mxu0 0.0
    %200 = vmatpush1.msra.mxu0 0.0
    %201 = vmatprep.subr.mxu0 0.0
    %202 = vmatpush1.msra.mxu0 0.0
    %203 = vmatprep.subr.mxu0 0.0
    %204 = vmatpush1.msra.mxu0 0.0
    %205 = vmatprep.subr.mxu0 0.0
    %206 = vmatpush1.msra.mxu0 0.0
    %207 = vmatprep.mubr.f32.mxu0 0.0
    %208 = vmatmul.mubr.f32.gmra.mrb[0].mxu0 %v138
    %v209 = vpop.f32.mrb[0].mxu0
    %v210 = vadd.f32 %v142, %v209
    %v211 = vpop.f32.mrb[0].mxu0
    %212 = vdwg.mxu0
    %v213 = vlaneseq
    %v214 = vand.u32 %v213, 127
    %vm215 = vcmp.lt.s32.totalorder %v214, 4
    %v216 = vsel %vm215, %v210, 0.0
    %217 = vadd.xlane.f32.xlu0 %v216
    %v218 = vpop.xlane.xlu0 %217
    %v219 = vrot.slane %v218, 4
    %v220 = vadd.f32 %v218, %v219
    %v221 = vrot.slane %v220, 2
    %v222 = vadd.f32 %v220, %v221
    %v223 = vrot.slane %v222, 1
    %v224 = vadd.f32 %v222, %v223
    %v225 = vmul.f32 %v224, 0.03125
    %vm226 = vcmp.eq.s32.totalorder %v214, 4
    %v227 = vsel %vm226, %v210, 0.0
    %228 = vadd.xlane.f32.xlu0 %v227
    %v229 = vpop.xlane.xlu0 %228
    %v230 = vsub.f32 %v229, %v225
    %v231 = vadd.f32 %v210, %v230
    %vm232 = vcmask 31744
    %233 = vst.msk [vmem:[%s2] sm:$0xff] %vm232, %v231
    // Predicated region
    $region18: #{tpu_custom_call.1} parent=1 // pred_check
      _
    $region19: #{tpu_custom_call.1} parent=1 // pred_check_branch
      %235 = sbr.rel (0) target = $region21
    $region20: #{tpu_custom_call.1} parent=1 // pred_region
      _
    $region21: #{tpu_custom_call.1} parent=1 // pred_fallthru
      _
    // Predicated region
    $region22: #{tpu_custom_call.1} parent=1 // pred_check
      _
    $region23: #{tpu_custom_call.1} parent=1 // pred_check_branch
      %237 = sbr.rel (0) target = $region25
    $region24: #{tpu_custom_call.1} parent=1 // pred_region
      _
    $region25: #{tpu_custom_call.1} parent=1 // pred_fallthru
      _
    %238 = vsyncpa [#allocation3], 1
    %239 = vsyncpa [#allocation5], 1

</llo_original>
